<compile_context>
chip_gen: v5e
topology: v5e:2x2
jax: 0.10.0
libtpu: 0.0.40
codegen_flags: <defaults>
</compile_context>

<pallas_src>
import functools

import jax
import jax.numpy as jnp
from jax import lax
from jax.experimental import pallas as pl
from jax.experimental.pallas import tpu as pltpu


def _round_up(a, m):
    return -(-a // m) * m


# ---------------------------------------------------------------------------
# Fast path: VMEM-resident tables, one-hot MXU gather.
# ---------------------------------------------------------------------------
def _skipgram_resident_kernel(t_ref, x_ref, tgt_ref, ctx_ref, o_ref):
    """t_ref/x_ref: VMEM int32 [1,1,TB]; tgt_ref/ctx_ref: VMEM [V,E] tables
    (resident across the grid); o_ref: VMEM f32 [1,1,TB] (lane-dense)."""
    V = tgt_ref.shape[0]
    TB = t_ref.shape[-1]

    t_idx = t_ref[0, 0, :]                                   # [TB] int32
    x_idx = x_ref[0, 0, :]
    col = lax.broadcasted_iota(jnp.int32, (TB, V), 1)
    oh_t = (t_idx[:, None] == col).astype(tgt_ref.dtype)     # [TB, V] one-hot
    oh_x = (x_idx[:, None] == col).astype(ctx_ref.dtype)

    # One-hot gather on the MXU.  HIGHEST precision keeps the f32 table values
    # exact through the MXU pass decomposition.
    tgt = jnp.dot(oh_t, tgt_ref[...], preferred_element_type=jnp.float32,
                  precision=lax.Precision.HIGHEST)           # [TB, E]
    ctx = jnp.dot(oh_x, ctx_ref[...], preferred_element_type=jnp.float32,
                  precision=lax.Precision.HIGHEST)           # [TB, E]

    o_ref[...] = jnp.sum(tgt * ctx, axis=1).reshape(1, 1, TB)


# ---------------------------------------------------------------------------
# General path: HBM tables, manual per-row gather DMAs.
# ---------------------------------------------------------------------------
def _skipgram_gather_kernel(TB, CH, t_ref, x_ref, tgt_hbm, ctx_hbm, o_ref,
                            tgt_buf, ctx_buf, sem):
    """One batch tile of TB rows.

    t_ref, x_ref    : SMEM int32 [Bp]        (scalar-prefetched indices)
    tgt_hbm/ctx_hbm : HBM refs [V, E]        (pl.ANY -- no automatic DMA)
    o_ref           : VMEM f32 [1, 1, TB]    (lane-dense per-tile output)
    tgt_buf/ctx_buf : VMEM scratch [TB, E]   (gathered embedding rows)
    sem             : DMA semaphores [2, TB // CH]  (one per table per chunk)
    """
    g = pl.program_id(0)
    base = g * TB
    nch = TB // CH

    # Phase 1: issue all 2*TB row-gather DMAs.  All scalar index reads happen
    # before any wait; rows of chunk c signal sem[:, c] (small sem pool).
    def issue(r, carry):
        t_i = t_ref[base + r]
        x_i = x_ref[base + r]
        c = r // CH
        pltpu.make_async_copy(
            tgt_hbm.at[pl.ds(t_i, 1), :], tgt_buf.at[pl.ds(r, 1), :],
            sem.at[0, c]).start()
        pltpu.make_async_copy(
            ctx_hbm.at[pl.ds(x_i, 1), :], ctx_buf.at[pl.ds(r, 1), :],
            sem.at[1, c]).start()
        return carry

    lax.fori_loop(0, TB, issue, 0, unroll=8)

    # Phase 2+3 fused: per chunk, wait for its CH row copies per table (wait
    # descriptors rebuilt with the same src/dst/sem as the started copies),
    # then multiply-reduce just that chunk.  This bounds vreg pressure and
    # overlaps compute of early chunks with DMA completion of later chunks.
    partial = []
    for c in range(nch):                                     # static, small
        def wait_rows(r, carry, c=c):
            row = c * CH + r
            t_i = t_ref[base + row]
            x_i = x_ref[base + row]
            pltpu.make_async_copy(
                tgt_hbm.at[pl.ds(t_i, 1), :], tgt_buf.at[pl.ds(row, 1), :],
                sem.at[0, c]).wait()
            pltpu.make_async_copy(
                ctx_hbm.at[pl.ds(x_i, 1), :], ctx_buf.at[pl.ds(row, 1), :],
                sem.at[1, c]).wait()
            return carry

        lax.fori_loop(0, CH, wait_rows, 0)

        lo, hi = c * CH, (c + 1) * CH
        t_chunk = tgt_buf[lo:hi, :].astype(jnp.float32)      # [CH, E]
        x_chunk = ctx_buf[lo:hi, :].astype(jnp.float32)
        partial.append(jnp.sum(t_chunk * x_chunk, axis=1))   # [CH]

    row_sums = jnp.concatenate(partial)                      # [TB]
    o_ref[...] = row_sums.reshape(1, 1, TB)                  # one dense store


# ---------------------------------------------------------------------------
# Wrapper
# ---------------------------------------------------------------------------
def skipgram_forward(x_idx, t_idx, target_emb, context_emb, *,
                     tile_b=128, force_gather=False):
    """Pallas equivalent of SkipGramNegativeSampling.forward(x, t) -> f32 [B]."""
    B = x_idx.shape[0]
    V, E = target_emb.shape
    assert context_emb.shape == (V, E)

    # Clamp indices: PyTorch raises on OOB; here an OOB index would otherwise
    # drive a raw HBM DMA (hardware fault).  Valid inputs are unchanged.
    x_i = jnp.clip(x_idx.astype(jnp.int32), 0, V - 1)
    t_i = jnp.clip(t_idx.astype(jnp.int32), 0, V - 1)

    # Batch tile: a multiple of 128 (lane-dense, unmasked vst) whenever the
    # batch is large enough; tiny batches collapse to a single small tile.
    pad8 = _round_up(B, 8)
    tile_b = max(8, (tile_b // 8) * 8)
    if pad8 >= 128:
        TB = max(128, (min(tile_b, pad8) // 128) * 128)
    else:
        TB = pad8
    G = -(-B // TB)
    Bp = G * TB

    def pad(v):
        # Pad rows gather row 0 (in range); their outputs are sliced off below.
        return jnp.zeros((Bp,), jnp.int32).at[:B].set(v)

    x_p, t_p = pad(x_i), pad(t_i)

    table_bytes = 2 * V * E * jnp.dtype(target_emb.dtype).itemsize
    # Resident fast path: one-hot matmul is only sensible for modest V, and the
    # 12 MiB cap keeps both tables (double-buffered) well inside v7x's 64 MiB
    # VMEM as well as v5e/v6e.
    use_resident = (not force_gather) and (V <= 2048) and (table_bytes <= 12 * 2**20)

    if use_resident:
        t_3d = t_p.reshape(G, 1, TB)
        x_3d = x_p.reshape(G, 1, TB)
        out = pl.pallas_call(
            _skipgram_resident_kernel,
            out_shape=jax.ShapeDtypeStruct((G, 1, TB), jnp.float32),
            grid_spec=pltpu.PrefetchScalarGridSpec(
                num_scalar_prefetch=0,
                grid=(G,),
                in_specs=[
                    pl.BlockSpec((1, 1, TB), lambda g: (g, 0, 0)),
                    pl.BlockSpec((1, 1, TB), lambda g: (g, 0, 0)),
                    # Constant index_map -> tables are fetched once and stay
                    # resident in VMEM across the whole batch grid.
                    pl.BlockSpec((V, E), lambda g: (0, 0)),
                    pl.BlockSpec((V, E), lambda g: (0, 0)),
                ],
                out_specs=pl.BlockSpec((1, 1, TB), lambda g: (g, 0, 0)),
            ),
            compiler_params=pltpu.CompilerParams(
                dimension_semantics=("parallel",),
                # Explicit scoped-VMEM cap, safe on v5e/v6e (128 MiB) and v7x
                # (64 MiB), and above v5e's 16 MiB default.
                vmem_limit_bytes=32 * 1024 * 1024,
            ),
        )(t_3d, x_3d, target_emb, context_emb)
    else:
        CH = 32 if TB % 32 == 0 else (16 if TB % 16 == 0 else 8)
        kernel = functools.partial(_skipgram_gather_kernel, TB, CH)
        out = pl.pallas_call(
            kernel,
            out_shape=jax.ShapeDtypeStruct((G, 1, TB), jnp.float32),
            grid_spec=pltpu.PrefetchScalarGridSpec(
                num_scalar_prefetch=2,                       # t_idx, x_idx -> SMEM
                grid=(G,),
                in_specs=[
                    pl.BlockSpec(memory_space=pl.ANY),       # target table (HBM)
                    pl.BlockSpec(memory_space=pl.ANY),       # context table (HBM)
                ],
                out_specs=pl.BlockSpec((1, 1, TB),
                                       lambda g, t_sr, x_sr: (g, 0, 0)),
                scratch_shapes=[
                    pltpu.VMEM((TB, E), target_emb.dtype),   # gathered target rows
                    pltpu.VMEM((TB, E), context_emb.dtype),  # gathered context rows
                    pltpu.SemaphoreType.DMA((2, TB // CH)),  # small sem pool
                ],
            ),
            compiler_params=pltpu.CompilerParams(
                dimension_semantics=("parallel",),
            ),
        )(t_p, x_p, target_emb, context_emb)

    return out.reshape(Bp)[:B]


if __name__ == "__main__":
    vocab_size = 64
    embedding_size = 128
    batch = 8

    key = jax.random.PRNGKey(0)
    k1, k2, k3, k4, k5, k6 = jax.random.split(key, 6)

    # nn.Embedding default init: weights ~ N(0, 1); deterministic in-script.
    target_emb = jax.random.normal(k1, (vocab_size, embedding_size), jnp.float32)
    context_emb = jax.random.normal(k2, (vocab_size, embedding_size), jnp.float32)

    x_idx = jax.random.randint(k3, (batch,), 0, vocab_size, dtype=jnp.int32)
    t_idx = jax.random.randint(k4, (batch,), 0, vocab_size, dtype=jnp.int32)

    ref = jnp.sum(target_emb[t_idx] * context_emb[x_idx], axis=1)

    # Path 1: small-vocab fast path (VMEM-resident tables, one-hot MXU gather).
    # Tolerance leaves headroom for the MXU's multi-pass f32 decomposition.
    pred = jax.block_until_ready(
        skipgram_forward(x_idx, t_idx, target_emb, context_emb))
    assert pred.shape == (batch,)
    assert jnp.allclose(pred, ref, atol=1e-2, rtol=1e-2), (pred, ref)

    # Path 2: HBM row-gather path (forced), with a batch large enough to use a
    # lane-dense 128-row tile, two grid steps and multiple wait/compute chunks.
    batch2 = 160
    x2 = jax.random.randint(k5, (batch2,), 0, vocab_size, dtype=jnp.int32)
    t2 = jax.random.randint(k6, (batch2,), 0, vocab_size, dtype=jnp.int32)
    ref2 = jnp.sum(target_emb[t2] * context_emb[x2], axis=1)
    pred2 = jax.block_until_ready(
        skipgram_forward(x2, t2, target_emb, context_emb, force_gather=True))
    assert pred2.shape == (batch2,)
    assert jnp.allclose(pred2, ref2, atol=1e-5, rtol=1e-5), (pred2, ref2)

    print("KERNEL_OK")
</pallas_src>

<mosaic_0001>
module attributes {stable_mosaic.version = 11 : i64} {
  func.func @_skipgram_resident_kernel(%arg0: i32, %arg1: memref<1x1x8xi32, #tpu.memory_space<vmem>>, %arg2: memref<1x1x8xi32, #tpu.memory_space<vmem>>, %arg3: memref<64x128xf32, #tpu.memory_space<vmem>>, %arg4: memref<64x128xf32, #tpu.memory_space<vmem>>, %arg5: memref<1x1x8xf32, #tpu.memory_space<vmem>>) attributes {dimension_semantics = [#tpu.dimension_semantics<parallel>], iteration_bounds = array<i64: 1>, scalar_prefetch = 0 : i64, scratch_operands = 0 : i64, tpu.core_type = #tpu.core_type<tc>, window_params = [{transform_indices = @transform_0, window_bounds = array<i64: 1, 1, 8>}, {transform_indices = @transform_1, window_bounds = array<i64: 1, 1, 8>}, {pipeline_mode = #tpu.pipeline_mode<synchronous>, transform_indices = @transform_2, window_bounds = array<i64: 64, 128>}, {pipeline_mode = #tpu.pipeline_mode<synchronous>, transform_indices = @transform_3, window_bounds = array<i64: 64, 128>}, {transform_indices = @transform_4, window_bounds = array<i64: 1, 1, 8>}]} {
    %c0 = arith.constant 0 : index
    %c0_0 = arith.constant 0 : index
    %c0_1 = arith.constant 0 : index
    %0 = vector.load %arg1[%c0, %c0_0, %c0_1] : memref<1x1x8xi32, #tpu.memory_space<vmem>>, vector<1x1x8xi32>
    %1 = vector.shape_cast %0 : vector<1x1x8xi32> to vector<8xi32>
    %c0_2 = arith.constant 0 : index
    %c0_3 = arith.constant 0 : index
    %c0_4 = arith.constant 0 : index
    %2 = vector.load %arg2[%c0_2, %c0_3, %c0_4] : memref<1x1x8xi32, #tpu.memory_space<vmem>>, vector<1x1x8xi32>
    %3 = vector.shape_cast %2 : vector<1x1x8xi32> to vector<8xi32>
    %4 = tpu.iota {dimensions = array<i32: 1>} : vector<8x64xi32>
    %5 = vector.shape_cast %1 : vector<8xi32> to vector<8x1xi32>
    %6 = vector.broadcast %5 : vector<8x1xi32> to vector<8x64xi32>
    %7 = arith.cmpi eq, %6, %4 : vector<8x64xi32>
    %8 = arith.extui %7 : vector<8x64xi1> to vector<8x64xi32>
    %9 = arith.sitofp %8 : vector<8x64xi32> to vector<8x64xf32>
    %10 = vector.shape_cast %3 : vector<8xi32> to vector<8x1xi32>
    %11 = vector.broadcast %10 : vector<8x1xi32> to vector<8x64xi32>
    %12 = arith.cmpi eq, %11, %4 : vector<8x64xi32>
    %13 = arith.extui %12 : vector<8x64xi1> to vector<8x64xi32>
    %14 = arith.sitofp %13 : vector<8x64xi32> to vector<8x64xf32>
    %c0_5 = arith.constant 0 : index
    %c0_6 = arith.constant 0 : index
    %15 = vector.load %arg3[%c0_5, %c0_6] : memref<64x128xf32, #tpu.memory_space<vmem>>, vector<64x128xf32>
    %cst = arith.constant dense<0.000000e+00> : vector<8x128xf32>
    %16 = tpu.matmul %9, %15, %cst {dimension_numbers = #tpu.dot_dimension_numbers<[1], [0], [0], [1], [0, 0, 1, 1], [], []>, precision = #tpu.contract_precision<fp32>} : vector<8x64xf32>, vector<64x128xf32>, vector<8x128xf32> -> vector<8x128xf32>
    %c0_7 = arith.constant 0 : index
    %c0_8 = arith.constant 0 : index
    %17 = vector.load %arg4[%c0_7, %c0_8] : memref<64x128xf32, #tpu.memory_space<vmem>>, vector<64x128xf32>
    %cst_9 = arith.constant dense<0.000000e+00> : vector<8x128xf32>
    %18 = tpu.matmul %14, %17, %cst_9 {dimension_numbers = #tpu.dot_dimension_numbers<[1], [0], [0], [1], [0, 0, 1, 1], [], []>, precision = #tpu.contract_precision<fp32>} : vector<8x64xf32>, vector<64x128xf32>, vector<8x128xf32> -> vector<8x128xf32>
    %19 = arith.mulf %16, %18 : vector<8x128xf32>
    %cst_10 = arith.constant dense<0.000000e+00> : vector<8xf32>
    %20 = vector.multi_reduction <add>, %19, %cst_10 [1] : vector<8x128xf32> to vector<8xf32>
    %21 = vector.shape_cast %20 : vector<8xf32> to vector<1x1x8xf32>
    %c0_11 = arith.constant 0 : index
    %c0_12 = arith.constant 0 : index
    %c0_13 = arith.constant 0 : index
    %22 = vector.load %arg5[%c0_11, %c0_12, %c0_13] : memref<1x1x8xf32, #tpu.memory_space<vmem>>, vector<1x1x8xf32>
    tpu.vector_store %arg5[%c0_11, %c0_12, %c0_13], %21 {strides = array<i32>} : memref<1x1x8xf32, #tpu.memory_space<vmem>>, vector<1x1x8xf32>,
    return
  }
  func.func @transform_0(%arg0: i32) -> (i32, i32, i32) {
    %c0_i32 = arith.constant 0 : i32
    %c0_i32_0 = arith.constant 0 : i32
    %c0_i32_1 = arith.constant 0 : i32
    return %arg0, %c0_i32, %c0_i32_0 : i32, i32, i32
  }
  func.func @transform_1(%arg0: i32) -> (i32, i32, i32) {
    %c0_i32 = arith.constant 0 : i32
    %c0_i32_0 = arith.constant 0 : i32
    %c0_i32_1 = arith.constant 0 : i32
    return %arg0, %c0_i32, %c0_i32_0 : i32, i32, i32
  }
  func.func @transform_2(%arg0: i32) -> (i32, i32) {
    %c0_i32 = arith.constant 0 : i32
    %c0_i32_0 = arith.constant 0 : i32
    %c0_i32_1 = arith.constant 0 : i32
    return %c0_i32, %c0_i32_0 : i32, i32
  }
  func.func @transform_3(%arg0: i32) -> (i32, i32) {
    %c0_i32 = arith.constant 0 : i32
    %c0_i32_0 = arith.constant 0 : i32
    %c0_i32_1 = arith.constant 0 : i32
    return %c0_i32, %c0_i32_0 : i32, i32
  }
  func.func @transform_4(%arg0: i32) -> (i32, i32, i32) {
    %c0_i32 = arith.constant 0 : i32
    %c0_i32_0 = arith.constant 0 : i32
    %c0_i32_1 = arith.constant 0 : i32
    return %arg0, %c0_i32, %c0_i32_0 : i32, i32, i32
  }
}

</mosaic_0001>

<llo_original>
// kernel: tpu_custom_call.1
$region0: #{tpu_custom_call.1}
  #allocation0 [shape = 'u32[]', space=smem, size = 0x4, offset = 0x4, fixed_abs, tag = 'smem constant byte address 0x4 - core index']
  #allocation1 [shape = 'u32[72,128]{1,0:T(1,128)}', space=vmem, size = 0x9000, scoped, tag = 'internal scratch']
  %s0 = inlined_call_operand.hbm [shape: s32[1,1,8], index: 0, kind: input, shape index: {}]
  %s1 = inlined_call_operand.hbm [shape: s32[1,1,8], index: 1, kind: input, shape index: {}]
  %s2 = inlined_call_operand.hbm [shape: f32[64,128], index: 2, kind: input, shape index: {}]
  %s3 = inlined_call_operand.hbm [shape: f32[64,128], index: 3, kind: input, shape index: {}]
  %s4 = inlined_call_operand.hbm [shape: f32[1,1,8], index: 4, kind: output, shape index: {}]
  %s5 = sld [smem:[#allocation0]]
  $region42: #{tpu_custom_call.1} parent=0
    _
  %s7 = ssub.s32 1, %s5
  %s8 = scalar_select 0, %s7, %s5
  $region1: #{tpu_custom_call.1} parent=0
    #allocation2 [shape = 'u8[512]{0}', space=vmem, size = 0x400, scoped, tag = 'input window, operand 0, single buffered']
    #allocation3 [shape = 's32[1]{0}', space=sflag, size = 0x4, scoped, tag = 'scoped memory for tpu_custom_call.1']
    #allocation4 [shape = 's32[1]{0}', space=sflag, size = 0x4, scoped, tag = 'scoped memory for tpu_custom_call.1']
    #allocation5 [shape = 'u8[512]{0}', space=vmem, size = 0x400, scoped, tag = 'input window, operand 1, single buffered']
    #allocation6 [shape = 's32[1]{0}', space=sflag, size = 0x4, scoped, tag = 'scoped memory for tpu_custom_call.1']
    #allocation7 [shape = 'u8[32768]{0}', space=vmem, size = 0x8000, scoped, tag = 'input window, operand 2, single buffered']
    #allocation8 [shape = 'u8[32768]{0}', space=vmem, size = 0x8000, scoped, tag = 'input window, operand 3, single buffered']
    #allocation9 [shape = 's32[1]{0}', space=sflag, size = 0x4, scoped, tag = 'scoped memory for tpu_custom_call.1']
    #allocation10 [shape = 'u8[512]{0}', space=vmem, size = 0x400, scoped, tag = 'output window, operand 0, single buffered']
    %9 = vsyncpa [#allocation3], 0
    %10 = vsyncpa [#allocation6], 0
    %11 = vsyncpa [#allocation9], 0
    %12 = vsyncpa [#allocation4], 0
    // Predicated region
    $region2: #{tpu_custom_call.1} parent=1 // pred_check
      _
    $region3: #{tpu_custom_call.1} parent=1 // pred_check_branch
      %14 = sbr.rel (0) target = $region5
    $region4: #{tpu_custom_call.1} parent=1 // pred_region
      %16 = vsyncadd [#allocation3], 0
      %s18 = sshll.u32 %s0, 4
      %s19 = int_to_ptr.hbm [resolvable:$true] %s18
      %s20 = sshll.u32 [#allocation2], 4
      %s21 = int_to_ptr.vmem [resolvable:$true] %s20
      %23 = dma.hbm_to_vmem [thread:$0]  %s19, 16, %s21, [#allocation3]
    $region5: #{tpu_custom_call.1} parent=1 // pred_fallthru
      _
    // Predicated region
    $region6: #{tpu_custom_call.1} parent=1 // pred_check
      _
    $region7: #{tpu_custom_call.1} parent=1 // pred_check_branch
      %25 = sbr.rel (0) target = $region9
    $region8: #{tpu_custom_call.1} parent=1 // pred_region
      %27 = vsyncadd [#allocation6], 0
      %s29 = sshll.u32 %s1, 4
      %s30 = int_to_ptr.hbm [resolvable:$true] %s29
      %s31 = sshll.u32 [#allocation5], 4
      %s32 = int_to_ptr.vmem [resolvable:$true] %s31
      %34 = dma.hbm_to_vmem [thread:$0]  %s30, 16, %s32, [#allocation6]
    $region9: #{tpu_custom_call.1} parent=1 // pred_fallthru
      _
    // Predicated region
    $region10: #{tpu_custom_call.1} parent=1 // pred_check
      _
    $region11: #{tpu_custom_call.1} parent=1 // pred_check_branch
      %36 = sbr.rel (0) target = $region13
    $region12: #{tpu_custom_call.1} parent=1 // pred_region
      %38 = vsyncadd [#allocation6], 0
      %s39 = sshll.u32 %s2, 4
      %s40 = int_to_ptr.hbm [resolvable:$true] %s39
      %s41 = sshll.u32 [#allocation7], 4
      %s42 = int_to_ptr.vmem [resolvable:$true] %s41
      %47 = dma.hbm_to_vmem [thread:$0]  %s40, 1024, %s42, [#allocation6], 128, 128, 8
    $region13: #{tpu_custom_call.1} parent=1 // pred_fallthru
      _
    // Predicated region
    $region14: #{tpu_custom_call.1} parent=1 // pred_check
      _
    $region15: #{tpu_custom_call.1} parent=1 // pred_check_branch
      %49 = sbr.rel (0) target = $region17
    $region16: #{tpu_custom_call.1} parent=1 // pred_region
      %51 = vsyncadd [#allocation9], 0
      %s52 = sshll.u32 %s3, 4
      %s53 = int_to_ptr.hbm [resolvable:$true] %s52
      %s54 = sshll.u32 [#allocation8], 4
      %s55 = int_to_ptr.vmem [resolvable:$true] %s54
      %60 = dma.hbm_to_vmem [thread:$0]  %s53, 1024, %s55, [#allocation9], 128, 128, 8
    $region17: #{tpu_custom_call.1} parent=1 // pred_fallthru
      _
    // Predicated region
    $region18: #{tpu_custom_call.1} parent=1 // pred_check
      _
    $region19: #{tpu_custom_call.1} parent=1 // pred_check_branch
      %62 = sbr.rel (0) target = $region21
    $region20: #{tpu_custom_call.1} parent=1 // pred_region
      %64 = dma.done [#allocation3], 16
    $region21: #{tpu_custom_call.1} parent=1 // pred_fallthru
      _
    // Predicated region
    $region22: #{tpu_custom_call.1} parent=1 // pred_check
      _
    $region23: #{tpu_custom_call.1} parent=1 // pred_check_branch
      %66 = sbr.rel (0) target = $region25
    $region24: #{tpu_custom_call.1} parent=1 // pred_region
      %68 = dma.done [#allocation6], 16
    $region25: #{tpu_custom_call.1} parent=1 // pred_fallthru
      _
    // Predicated region
    $region26: #{tpu_custom_call.1} parent=1 // pred_check
      _
    $region27: #{tpu_custom_call.1} parent=1 // pred_check_branch
      %70 = sbr.rel (0) target = $region29
    $region28: #{tpu_custom_call.1} parent=1 // pred_region
      %72 = dma.done [#allocation6], 1024
    $region29: #{tpu_custom_call.1} parent=1 // pred_fallthru
      _
    // Predicated region
    $region30: #{tpu_custom_call.1} parent=1 // pred_check
      _
    $region31: #{tpu_custom_call.1} parent=1 // pred_check_branch
      %74 = sbr.rel (0) target = $region33
    $region32: #{tpu_custom_call.1} parent=1 // pred_region
      %76 = dma.done [#allocation9], 1024
    $region33: #{tpu_custom_call.1} parent=1 // pred_fallthru
      _
    %v77 = vld [vmem:[#allocation2] sm:$0x1]
    %v78 = vld [vmem:[#allocation5] sm:$0x1]
    %v79 = vlaneseq
    %v80 = vand.u32 %v79, 127
    %v81 = vperm.slane %v77, 0
    %v82 = vlaneseq
    %v83 = vshrl.u32 %v82, 7
    %85 = vset.pattern.permute.xlu0 %v83
    %86 = vperm.xlu0 %85, %v81
    %v87 = vpop.permute.xlu0 %86
    %vm88 = vcmp.eq.s32.totalorder %v87, %v80
    %v89 = vsel %vm88, 1, 0
    %v90 = vcvt.s32.f32 %v89
    %v91 = vperm.slane %v78, 0
    %v92 = vlaneseq
    %v93 = vshrl.u32 %v92, 7
    %95 = vset.pattern.permute.xlu0 %v93
    %96 = vperm.xlu0 %95, %v91
    %v97 = vpop.permute.xlu0 %96
    %vm98 = vcmp.eq.s32.totalorder %v97, %v80
    %v99 = vsel %vm98, 1, 0
    %v100 = vcvt.s32.f32 %v99
    %v101 = vld [vmem:[#allocation7] sm:$0xff]
    %v102 = vld [vmem:[#allocation7 + $0x8] sm:$0xff]
    %v103 = vld [vmem:[#allocation7 + $0x10] sm:$0xff]
    %v104 = vld [vmem:[#allocation7 + $0x18] sm:$0xff]
    %v105 = vld [vmem:[#allocation7 + $0x20] sm:$0xff]
    %v106 = vld [vmem:[#allocation7 + $0x28] sm:$0xff]
    %v107 = vld [vmem:[#allocation7 + $0x30] sm:$0xff]
    %v108 = vld [vmem:[#allocation7 + $0x38] sm:$0xff]
    %vm109 = vcmask 523264
    %v111 = vsel %vm109, %v90, 0
    %113 = vmatpush.msra.mxu0 0.0
    %114 = vmatpush.msra.mxu0 0.0
    %115 = vmatpush.msra.mxu0 0.0
    %116 = vmatpush.msra.mxu0 0.0
    %117 = vmatpush.msra.mxu0 0.0
    %118 = vmatpush.msra.mxu0 0.0
    %119 = vmatpush.msra.mxu0 0.0
    %120 = vmatpush.msra.mxu0 0.0
    %v121 = vand.u32 %v108, 4294901760
    %122 = vmatpush.msra.mxu0 %v121
    %v123 = vand.u32 %v107, 4294901760
    %124 = vmatpush.msra.mxu0 %v123
    %v125 = vand.u32 %v106, 4294901760
    %126 = vmatpush.msra.mxu0 %v125
    %v127 = vand.u32 %v105, 4294901760
    %128 = vmatpush.msra.mxu0 %v127
    %v129 = vand.u32 %v104, 4294901760
    %130 = vmatpush.msra.mxu0 %v129
    %v131 = vand.u32 %v103, 4294901760
    %132 = vmatpush.msra.mxu0 %v131
    %v133 = vand.u32 %v102, 4294901760
    %134 = vmatpush.msra.mxu0 %v133
    %v135 = vand.u32 %v101, 4294901760
    %136 = vmatpush.msra.mxu0 %v135
    %v137 = vand.u32 %v111, 4294901760
    %v138 = vsub.f32 %v111, %v137
    %v139 = vand.u32 %v138, 4294901760
    %v140 = vsub.f32 %v138, %v139
    %v141 = vand.u32 %v140, 4294901760
    %142 = vmatmul.f32.gmra.mxu0 %v141
    %v143 = vpop.f32.mrf.mxu0
    %v144 = vadd.f32 0.0, %v143
    %145 = vdwg.mxu0
    %146 = vmatpush.msra.mxu0 0.0
    %147 = vmatpush.msra.mxu0 0.0
    %148 = vmatpush.msra.mxu0 0.0
    %149 = vmatpush.msra.mxu0 0.0
    %150 = vmatpush.msra.mxu0 0.0
    %151 = vmatpush.msra.mxu0 0.0
    %152 = vmatpush.msra.mxu0 0.0
    %153 = vmatpush.msra.mxu0 0.0
    %v154 = vand.u32 %v108, 4294901760
    %v155 = vsub.f32 %v108, %v154
    %v156 = vand.u32 %v155, 4294901760
    %v157 = vsub.f32 %v155, %v156
    %v158 = vand.u32 %v157, 4294901760
    %159 = vmatpush.msra.mxu0 %v158
    %v160 = vand.u32 %v107, 4294901760
    %v161 = vsub.f32 %v107, %v160
    %v162 = vand.u32 %v161, 4294901760
    %v163 = vsub.f32 %v161, %v162
    %v164 = vand.u32 %v163, 4294901760
    %165 = vmatpush.msra.mxu0 %v164
    %v166 = vand.u32 %v106, 4294901760
    %v167 = vsub.f32 %v106, %v166
    %v168 = vand.u32 %v167, 4294901760
    %v169 = vsub.f32 %v167, %v168
    %v170 = vand.u32 %v169, 4294901760
    %171 = vmatpush.msra.mxu0 %v170
    %v172 = vand.u32 %v105, 4294901760
    %v173 = vsub.f32 %v105, %v172
    %v174 = vand.u32 %v173, 4294901760
    %v175 = vsub.f32 %v173, %v174
    %v176 = vand.u32 %v175, 4294901760
    %177 = vmatpush.msra.mxu0 %v176
    %v178 = vand.u32 %v104, 4294901760
    %v179 = vsub.f32 %v104, %v178
    %v180 = vand.u32 %v179, 4294901760
    %v181 = vsub.f32 %v179, %v180
    %v182 = vand.u32 %v181, 4294901760
    %183 = vmatpush.msra.mxu0 %v182
    %v184 = vand.u32 %v103, 4294901760
    %v185 = vsub.f32 %v103, %v184
    %v186 = vand.u32 %v185, 4294901760
    %v187 = vsub.f32 %v185, %v186
    %v188 = vand.u32 %v187, 4294901760
    %189 = vmatpush.msra.mxu0 %v188
    %v190 = vand.u32 %v102, 4294901760
    %v191 = vsub.f32 %v102, %v190
    %v192 = vand.u32 %v191, 4294901760
    %v193 = vsub.f32 %v191, %v192
    %v194 = vand.u32 %v193, 4294901760
    %195 = vmatpush.msra.mxu0 %v194
    %v196 = vand.u32 %v101, 4294901760
    %v197 = vsub.f32 %v101, %v196
    %v198 = vand.u32 %v197, 4294901760
    %v199 = vsub.f32 %v197, %v198
    %v200 = vand.u32 %v199, 4294901760
    %201 = vmatpush.msra.mxu0 %v200
    %v202 = vand.u32 %v111, 4294901760
    %203 = vmatmul.f32.gmra.mxu0 %v202
    %v204 = vpop.f32.mrf.mxu0
    %v205 = vadd.f32 %v144, %v204
    %206 = vdwg.mxu0
    %207 = vmatpush.msra.mxu0 0.0
    %208 = vmatpush.msra.mxu0 0.0
    %209 = vmatpush.msra.mxu0 0.0
    %210 = vmatpush.msra.mxu0 0.0
    %211 = vmatpush.msra.mxu0 0.0
    %212 = vmatpush.msra.mxu0 0.0
    %213 = vmatpush.msra.mxu0 0.0
    %214 = vmatpush.msra.mxu0 0.0
    %v215 = vand.u32 %v108, 4294901760
    %v216 = vsub.f32 %v108, %v215
    %217 = vmatpush.msra.mxu0 %v216
    %v218 = vand.u32 %v107, 4294901760
    %v219 = vsub.f32 %v107, %v218
    %220 = vmatpush.msra.mxu0 %v219
    %v221 = vand.u32 %v106, 4294901760
    %v222 = vsub.f32 %v106, %v221
    %223 = vmatpush.msra.mxu0 %v222
    %v224 = vand.u32 %v105, 4294901760
    %v225 = vsub.f32 %v105, %v224
    %226 = vmatpush.msra.mxu0 %v225
    %v227 = vand.u32 %v104, 4294901760
    %v228 = vsub.f32 %v104, %v227
    %229 = vmatpush.msra.mxu0 %v228
    %v230 = vand.u32 %v103, 4294901760
    %v231 = vsub.f32 %v103, %v230
    %232 = vmatpush.msra.mxu0 %v231
    %v233 = vand.u32 %v102, 4294901760
    %v234 = vsub.f32 %v102, %v233
    %235 = vmatpush.msra.mxu0 %v234
    %v236 = vand.u32 %v101, 4294901760
    %v237 = vsub.f32 %v101, %v236
    %238 = vmatpush.msra.mxu0 %v237
    %v239 = vand.u32 %v111, 4294901760
    %v240 = vsub.f32 %v111, %v239
    %241 = vmatmul.f32.gmra.mxu0 %v240
    %v242 = vpop.f32.mrf.mxu0
    %v243 = vadd.f32 %v205, %v242
    %244 = vdwg.mxu0
    %245 = vmatpush.msra.mxu0 0.0
    %246 = vmatpush.msra.mxu0 0.0
    %247 = vmatpush.msra.mxu0 0.0
    %248 = vmatpush.msra.mxu0 0.0
    %249 = vmatpush.msra.mxu0 0.0
    %250 = vmatpush.msra.mxu0 0.0
    %251 = vmatpush.msra.mxu0 0.0
    %252 = vmatpush.msra.mxu0 0.0
    %v253 = vand.u32 %v108, 4294901760
    %254 = vmatpush.msra.mxu0 %v253
    %v255 = vand.u32 %v107, 4294901760
    %256 = vmatpush.msra.mxu0 %v255
    %v257 = vand.u32 %v106, 4294901760
    %258 = vmatpush.msra.mxu0 %v257
    %v259 = vand.u32 %v105, 4294901760
    %260 = vmatpush.msra.mxu0 %v259
    %v261 = vand.u32 %v104, 4294901760
    %262 = vmatpush.msra.mxu0 %v261
    %v263 = vand.u32 %v103, 4294901760
    %264 = vmatpush.msra.mxu0 %v263
    %v265 = vand.u32 %v102, 4294901760
    %266 = vmatpush.msra.mxu0 %v265
    %v267 = vand.u32 %v101, 4294901760
    %268 = vmatpush.msra.mxu0 %v267
    %v269 = vand.u32 %v111, 4294901760
    %v270 = vsub.f32 %v111, %v269
    %v271 = vand.u32 %v270, 4294901760
    %272 = vmatmul.f32.gmra.mxu0 %v271
    %v273 = vpop.f32.mrf.mxu0
    %v274 = vadd.f32 %v243, %v273
    %275 = vdwg.mxu0
    %276 = vmatpush.msra.mxu0 0.0
    %277 = vmatpush.msra.mxu0 0.0
    %278 = vmatpush.msra.mxu0 0.0
    %279 = vmatpush.msra.mxu0 0.0
    %280 = vmatpush.msra.mxu0 0.0
    %281 = vmatpush.msra.mxu0 0.0
    %282 = vmatpush.msra.mxu0 0.0
    %283 = vmatpush.msra.mxu0 0.0
    %v284 = vand.u32 %v108, 4294901760
    %v285 = vsub.f32 %v108, %v284
    %v286 = vand.u32 %v285, 4294901760
    %287 = vmatpush.msra.mxu0 %v286
    %v288 = vand.u32 %v107, 4294901760
    %v289 = vsub.f32 %v107, %v288
    %v290 = vand.u32 %v289, 4294901760
    %291 = vmatpush.msra.mxu0 %v290
    %v292 = vand.u32 %v106, 4294901760
    %v293 = vsub.f32 %v106, %v292
    %v294 = vand.u32 %v293, 4294901760
    %295 = vmatpush.msra.mxu0 %v294
    %v296 = vand.u32 %v105, 4294901760
    %v297 = vsub.f32 %v105, %v296
    %v298 = vand.u32 %v297, 4294901760
    %299 = vmatpush.msra.mxu0 %v298
    %v300 = vand.u32 %v104, 4294901760
    %v301 = vsub.f32 %v104, %v300
    %v302 = vand.u32 %v301, 4294901760
    %303 = vmatpush.msra.mxu0 %v302
    %v304 = vand.u32 %v103, 4294901760
    %v305 = vsub.f32 %v103, %v304
    %v306 = vand.u32 %v305, 4294901760
    %307 = vmatpush.msra.mxu0 %v306
    %v308 = vand.u32 %v102, 4294901760
    %v309 = vsub.f32 %v102, %v308
    %v310 = vand.u32 %v309, 4294901760
    %311 = vmatpush.msra.mxu0 %v310
    %v312 = vand.u32 %v101, 4294901760
    %v313 = vsub.f32 %v101, %v312
    %v314 = vand.u32 %v313, 4294901760
    %315 = vmatpush.msra.mxu0 %v314
    %v316 = vand.u32 %v111, 4294901760
    %317 = vmatmul.f32.gmra.mxu0 %v316
    %v318 = vpop.f32.mrf.mxu0
    %v319 = vadd.f32 %v274, %v318
    %320 = vdwg.mxu0
    %321 = vmatpush.msra.mxu0 0.0
    %322 = vmatpush.msra.mxu0 0.0
    %323 = vmatpush.msra.mxu0 0.0
    %324 = vmatpush.msra.mxu0 0.0
    %325 = vmatpush.msra.mxu0 0.0
    %326 = vmatpush.msra.mxu0 0.0
    %327 = vmatpush.msra.mxu0 0.0
    %328 = vmatpush.msra.mxu0 0.0
    %v329 = vand.u32 %v108, 4294901760
    %330 = vmatpush.msra.mxu0 %v329
    %v331 = vand.u32 %v107, 4294901760
    %332 = vmatpush.msra.mxu0 %v331
    %v333 = vand.u32 %v106, 4294901760
    %334 = vmatpush.msra.mxu0 %v333
    %v335 = vand.u32 %v105, 4294901760
    %336 = vmatpush.msra.mxu0 %v335
    %v337 = vand.u32 %v104, 4294901760
    %338 = vmatpush.msra.mxu0 %v337
    %v339 = vand.u32 %v103, 4294901760
    %340 = vmatpush.msra.mxu0 %v339
    %v341 = vand.u32 %v102, 4294901760
    %342 = vmatpush.msra.mxu0 %v341
    %v343 = vand.u32 %v101, 4294901760
    %344 = vmatpush.msra.mxu0 %v343
    %v345 = vand.u32 %v111, 4294901760
    %346 = vmatmul.f32.gmra.mxu0 %v345
    %v347 = vpop.f32.mrf.mxu0
    %v348 = vadd.f32 %v319, %v347
    %349 = vdwg.mxu0
    %v350 = vld [vmem:[#allocation8] sm:$0xff]
    %v351 = vld [vmem:[#allocation8 + $0x8] sm:$0xff]
    %v352 = vld [vmem:[#allocation8 + $0x10] sm:$0xff]
    %v353 = vld [vmem:[#allocation8 + $0x18] sm:$0xff]
    %v354 = vld [vmem:[#allocation8 + $0x20] sm:$0xff]
    %v355 = vld [vmem:[#allocation8 + $0x28] sm:$0xff]
    %v356 = vld [vmem:[#allocation8 + $0x30] sm:$0xff]
    %v357 = vld [vmem:[#allocation8 + $0x38] sm:$0xff]
    %v359 = vsel %vm109, %v100, 0
    %361 = vmatpush.msra.mxu0 0.0
    %362 = vmatpush.msra.mxu0 0.0
    %363 = vmatpush.msra.mxu0 0.0
    %364 = vmatpush.msra.mxu0 0.0
    %365 = vmatpush.msra.mxu0 0.0
    %366 = vmatpush.msra.mxu0 0.0
    %367 = vmatpush.msra.mxu0 0.0
    %368 = vmatpush.msra.mxu0 0.0
    %v369 = vand.u32 %v357, 4294901760
    %370 = vmatpush.msra.mxu0 %v369
    %v371 = vand.u32 %v356, 4294901760
    %372 = vmatpush.msra.mxu0 %v371
    %v373 = vand.u32 %v355, 4294901760
    %374 = vmatpush.msra.mxu0 %v373
    %v375 = vand.u32 %v354, 4294901760
    %376 = vmatpush.msra.mxu0 %v375
    %v377 = vand.u32 %v353, 4294901760
    %378 = vmatpush.msra.mxu0 %v377
    %v379 = vand.u32 %v352, 4294901760
    %380 = vmatpush.msra.mxu0 %v379
    %v381 = vand.u32 %v351, 4294901760
    %382 = vmatpush.msra.mxu0 %v381
    %v383 = vand.u32 %v350, 4294901760
    %384 = vmatpush.msra.mxu0 %v383
    %v385 = vand.u32 %v359, 4294901760
    %v386 = vsub.f32 %v359, %v385
    %v387 = vand.u32 %v386, 4294901760
    %v388 = vsub.f32 %v386, %v387
    %v389 = vand.u32 %v388, 4294901760
    %390 = vmatmul.f32.gmra.mxu0 %v389
    %v391 = vpop.f32.mrf.mxu0
    %v392 = vadd.f32 0.0, %v391
    %393 = vdwg.mxu0
    %394 = vmatpush.msra.mxu0 0.0
    %395 = vmatpush.msra.mxu0 0.0
    %396 = vmatpush.msra.mxu0 0.0
    %397 = vmatpush.msra.mxu0 0.0
    %398 = vmatpush.msra.mxu0 0.0
    %399 = vmatpush.msra.mxu0 0.0
    %400 = vmatpush.msra.mxu0 0.0
    %401 = vmatpush.msra.mxu0 0.0
    %v402 = vand.u32 %v357, 4294901760
    %v403 = vsub.f32 %v357, %v402
    %v404 = vand.u32 %v403, 4294901760
    %v405 = vsub.f32 %v403, %v404
    %v406 = vand.u32 %v405, 4294901760
    %407 = vmatpush.msra.mxu0 %v406
    %v408 = vand.u32 %v356, 4294901760
    %v409 = vsub.f32 %v356, %v408
    %v410 = vand.u32 %v409, 4294901760
    %v411 = vsub.f32 %v409, %v410
    %v412 = vand.u32 %v411, 4294901760
    %413 = vmatpush.msra.mxu0 %v412
    %v414 = vand.u32 %v355, 4294901760
    %v415 = vsub.f32 %v355, %v414
    %v416 = vand.u32 %v415, 4294901760
    %v417 = vsub.f32 %v415, %v416
    %v418 = vand.u32 %v417, 4294901760
    %419 = vmatpush.msra.mxu0 %v418
    %v420 = vand.u32 %v354, 4294901760
    %v421 = vsub.f32 %v354, %v420
    %v422 = vand.u32 %v421, 4294901760
    %v423 = vsub.f32 %v421, %v422
    %v424 = vand.u32 %v423, 4294901760
    %425 = vmatpush.msra.mxu0 %v424
    %v426 = vand.u32 %v353, 4294901760
    %v427 = vsub.f32 %v353, %v426
    %v428 = vand.u32 %v427, 4294901760
    %v429 = vsub.f32 %v427, %v428
    %v430 = vand.u32 %v429, 4294901760
    %431 = vmatpush.msra.mxu0 %v430
    %v432 = vand.u32 %v352, 4294901760
    %v433 = vsub.f32 %v352, %v432
    %v434 = vand.u32 %v433, 4294901760
    %v435 = vsub.f32 %v433, %v434
    %v436 = vand.u32 %v435, 4294901760
    %437 = vmatpush.msra.mxu0 %v436
    %v438 = vand.u32 %v351, 4294901760
    %v439 = vsub.f32 %v351, %v438
    %v440 = vand.u32 %v439, 4294901760
    %v441 = vsub.f32 %v439, %v440
    %v442 = vand.u32 %v441, 4294901760
    %443 = vmatpush.msra.mxu0 %v442
    %v444 = vand.u32 %v350, 4294901760
    %v445 = vsub.f32 %v350, %v444
    %v446 = vand.u32 %v445, 4294901760
    %v447 = vsub.f32 %v445, %v446
    %v448 = vand.u32 %v447, 4294901760
    %449 = vmatpush.msra.mxu0 %v448
    %v450 = vand.u32 %v359, 4294901760
    %451 = vmatmul.f32.gmra.mxu0 %v450
    %v452 = vpop.f32.mrf.mxu0
    %v453 = vadd.f32 %v392, %v452
    %454 = vdwg.mxu0
    %455 = vmatpush.msra.mxu0 0.0
    %456 = vmatpush.msra.mxu0 0.0
    %457 = vmatpush.msra.mxu0 0.0
    %458 = vmatpush.msra.mxu0 0.0
    %459 = vmatpush.msra.mxu0 0.0
    %460 = vmatpush.msra.mxu0 0.0
    %461 = vmatpush.msra.mxu0 0.0
    %462 = vmatpush.msra.mxu0 0.0
    %v463 = vand.u32 %v357, 4294901760
    %v464 = vsub.f32 %v357, %v463
    %465 = vmatpush.msra.mxu0 %v464
    %v466 = vand.u32 %v356, 4294901760
    %v467 = vsub.f32 %v356, %v466
    %468 = vmatpush.msra.mxu0 %v467
    %v469 = vand.u32 %v355, 4294901760
    %v470 = vsub.f32 %v355, %v469
    %471 = vmatpush.msra.mxu0 %v470
    %v472 = vand.u32 %v354, 4294901760
    %v473 = vsub.f32 %v354, %v472
    %474 = vmatpush.msra.mxu0 %v473
    %v475 = vand.u32 %v353, 4294901760
    %v476 = vsub.f32 %v353, %v475
    %477 = vmatpush.msra.mxu0 %v476
    %v478 = vand.u32 %v352, 4294901760
    %v479 = vsub.f32 %v352, %v478
    %480 = vmatpush.msra.mxu0 %v479
    %v481 = vand.u32 %v351, 4294901760
    %v482 = vsub.f32 %v351, %v481
    %483 = vmatpush.msra.mxu0 %v482
    %v484 = vand.u32 %v350, 4294901760
    %v485 = vsub.f32 %v350, %v484
    %486 = vmatpush.msra.mxu0 %v485
    %v487 = vand.u32 %v359, 4294901760
    %v488 = vsub.f32 %v359, %v487
    %489 = vmatmul.f32.gmra.mxu0 %v488
    %v490 = vpop.f32.mrf.mxu0
    %v491 = vadd.f32 %v453, %v490
    %492 = vdwg.mxu0
    %493 = vmatpush.msra.mxu0 0.0
    %494 = vmatpush.msra.mxu0 0.0
    %495 = vmatpush.msra.mxu0 0.0
    %496 = vmatpush.msra.mxu0 0.0
    %497 = vmatpush.msra.mxu0 0.0
    %498 = vmatpush.msra.mxu0 0.0
    %499 = vmatpush.msra.mxu0 0.0
    %500 = vmatpush.msra.mxu0 0.0
    %v501 = vand.u32 %v357, 4294901760
    %502 = vmatpush.msra.mxu0 %v501
    %v503 = vand.u32 %v356, 4294901760
    %504 = vmatpush.msra.mxu0 %v503
    %v505 = vand.u32 %v355, 4294901760
    %506 = vmatpush.msra.mxu0 %v505
    %v507 = vand.u32 %v354, 4294901760
    %508 = vmatpush.msra.mxu0 %v507
    %v509 = vand.u32 %v353, 4294901760
    %510 = vmatpush.msra.mxu0 %v509
    %v511 = vand.u32 %v352, 4294901760
    %512 = vmatpush.msra.mxu0 %v511
    %v513 = vand.u32 %v351, 4294901760
    %514 = vmatpush.msra.mxu0 %v513
    %v515 = vand.u32 %v350, 4294901760
    %516 = vmatpush.msra.mxu0 %v515
    %v517 = vand.u32 %v359, 4294901760
    %v518 = vsub.f32 %v359, %v517
    %v519 = vand.u32 %v518, 4294901760
    %520 = vmatmul.f32.gmra.mxu0 %v519
    %v521 = vpop.f32.mrf.mxu0
    %v522 = vadd.f32 %v491, %v521
    %523 = vdwg.mxu0
    %524 = vmatpush.msra.mxu0 0.0
    %525 = vmatpush.msra.mxu0 0.0
    %526 = vmatpush.msra.mxu0 0.0
    %527 = vmatpush.msra.mxu0 0.0
    %528 = vmatpush.msra.mxu0 0.0
    %529 = vmatpush.msra.mxu0 0.0
    %530 = vmatpush.msra.mxu0 0.0
    %531 = vmatpush.msra.mxu0 0.0
    %v532 = vand.u32 %v357, 4294901760
    %v533 = vsub.f32 %v357, %v532
    %v534 = vand.u32 %v533, 4294901760
    %535 = vmatpush.msra.mxu0 %v534
    %v536 = vand.u32 %v356, 4294901760
    %v537 = vsub.f32 %v356, %v536
    %v538 = vand.u32 %v537, 4294901760
    %539 = vmatpush.msra.mxu0 %v538
    %v540 = vand.u32 %v355, 4294901760
    %v541 = vsub.f32 %v355, %v540
    %v542 = vand.u32 %v541, 4294901760
    %543 = vmatpush.msra.mxu0 %v542
    %v544 = vand.u32 %v354, 4294901760
    %v545 = vsub.f32 %v354, %v544
    %v546 = vand.u32 %v545, 4294901760
    %547 = vmatpush.msra.mxu0 %v546
    %v548 = vand.u32 %v353, 4294901760
    %v549 = vsub.f32 %v353, %v548
    %v550 = vand.u32 %v549, 4294901760
    %551 = vmatpush.msra.mxu0 %v550
    %v552 = vand.u32 %v352, 4294901760
    %v553 = vsub.f32 %v352, %v552
    %v554 = vand.u32 %v553, 4294901760
    %555 = vmatpush.msra.mxu0 %v554
    %v556 = vand.u32 %v351, 4294901760
    %v557 = vsub.f32 %v351, %v556
    %v558 = vand.u32 %v557, 4294901760
    %559 = vmatpush.msra.mxu0 %v558
    %v560 = vand.u32 %v350, 4294901760
    %v561 = vsub.f32 %v350, %v560
    %v562 = vand.u32 %v561, 4294901760
    %563 = vmatpush.msra.mxu0 %v562
    %v564 = vand.u32 %v359, 4294901760
    %565 = vmatmul.f32.gmra.mxu0 %v564
    %v566 = vpop.f32.mrf.mxu0
    %v567 = vadd.f32 %v522, %v566
    %568 = vdwg.mxu0
    %569 = vmatpush.msra.mxu0 0.0
    %570 = vmatpush.msra.mxu0 0.0
    %571 = vmatpush.msra.mxu0 0.0
    %572 = vmatpush.msra.mxu0 0.0
    %573 = vmatpush.msra.mxu0 0.0
    %574 = vmatpush.msra.mxu0 0.0
    %575 = vmatpush.msra.mxu0 0.0
    %576 = vmatpush.msra.mxu0 0.0
    %v577 = vand.u32 %v357, 4294901760
    %578 = vmatpush.msra.mxu0 %v577
    %v579 = vand.u32 %v356, 4294901760
    %580 = vmatpush.msra.mxu0 %v579
    %v581 = vand.u32 %v355, 4294901760
    %582 = vmatpush.msra.mxu0 %v581
    %v583 = vand.u32 %v354, 4294901760
    %584 = vmatpush.msra.mxu0 %v583
    %v585 = vand.u32 %v353, 4294901760
    %586 = vmatpush.msra.mxu0 %v585
    %v587 = vand.u32 %v352, 4294901760
    %588 = vmatpush.msra.mxu0 %v587
    %v589 = vand.u32 %v351, 4294901760
    %590 = vmatpush.msra.mxu0 %v589
    %v591 = vand.u32 %v350, 4294901760
    %592 = vmatpush.msra.mxu0 %v591
    %v593 = vand.u32 %v359, 4294901760
    %594 = vmatmul.f32.gmra.mxu0 %v593
    %v595 = vpop.f32.mrf.mxu0
    %v596 = vadd.f32 %v567, %v595
    %597 = vdwg.mxu0
    %v598 = vmul.f32 %v348, %v596
    %599 = vadd.xlane.f32.xlu0 %v598
    %v600 = vpop.xlane.xlu0 %599
    %v602 = vperm.slane %v600, %v80
    %vm604 = vcmask 57344
    %605 = vst.msk [vmem:[#allocation10] sm:$0x1] %vm604, %v602
    // Predicated region
    $region34: #{tpu_custom_call.1} parent=1 // pred_check
      _
    $region35: #{tpu_custom_call.1} parent=1 // pred_check_branch
      %607 = sbr.rel (0) target = $region37
    $region36: #{tpu_custom_call.1} parent=1 // pred_region
      %609 = vsyncadd [#allocation4], 0
      %s611 = sshll.u32 [#allocation10], 4
      %s612 = int_to_ptr.vmem [resolvable:$true] %s611
      %s613 = sshll.u32 %s4, 4
      %s614 = int_to_ptr.hbm [resolvable:$true] %s613
      %616 = dma.vmem_to_hbm [thread:$0]  %s612, 16, %s614, [#allocation4]
    $region37: #{tpu_custom_call.1} parent=1 // pred_fallthru
      _
    // Predicated region
    $region38: #{tpu_custom_call.1} parent=1 // pred_check
      _
    $region39: #{tpu_custom_call.1} parent=1 // pred_check_branch
      %618 = sbr.rel (0) target = $region41
    $region40: #{tpu_custom_call.1} parent=1 // pred_region
      %620 = dma.done [#allocation4], 16
    $region41: #{tpu_custom_call.1} parent=1 // pred_fallthru
      _
    %621 = vsyncpa [#allocation3], 1
    %622 = vsyncpa [#allocation6], 1
    %623 = vsyncpa [#allocation9], 1
    %624 = vsyncpa [#allocation4], 1

</llo_original>
